<compile_context>
chip_gen: v6e
topology: v6e:2x2x1
jax: 0.10.0
libtpu: 0.0.40
codegen_flags: <defaults>
</compile_context>

<pallas_src>
import functools

import jax
import jax.numpy as jnp
from jax.experimental import pallas as pl
from jax.experimental.pallas import tpu as pltpu

SELU_ALPHA = 1.6732632423543772848170429916717
SELU_SCALE = 1.0507009873554804934193349852946
IN_EPS = 1e-5


def _selu(v):
    return SELU_SCALE * jnp.where(v > 0, v, SELU_ALPHA * (jnp.exp(v) - 1.0))


# ------------------------------ kernel --------------------------------------

def big_res_block_kernel(mask_ref, x_ref, wada_ref, w1_ref, w2_ref, w3_ref,
                         w4_ref, o_ref, *, H, W):
    # x_ref : (nb*Cin, HW)    o_ref : (nb*Cout, HW)
    # wada  : (g*Cout, g*Cin)   w1  : (g*Ct, g*Cin)
    # w2/w3 : (g*Ct, 9*g*Ct)   (per-tap block-diagonal, tap-major K ordering)
    # w4    : (g*Cout, g*Ct)  mask : (8, HW) float32 0/1 masks for the 8 taps
    HW = H * W
    gcin = w1_ref.shape[1]
    gcout = w4_ref.shape[0]
    n_groups = x_ref.shape[0] // gcin

    # Weights / masks are tiny; keep them resident for the whole grid step.
    wada = wada_ref[...]
    w1 = w1_ref[...]
    w2 = w2_ref[...]
    w3 = w3_ref[...]
    w4 = w4_ref[...]
    tmask = mask_ref[...]                       # (8, HW) float32

    def conv3x3(v, w_folded):
        # v: (g*Ct, HW) f32.  Build the 9 shifted/masked taps (XLU rolls + VPU
        # multiplies), stack along sublanes and do ONE MXU matmul (K=9*g*Ct).
        taps = []
        mi = 0
        for kh in range(3):
            for kw in range(3):
                off = (kh - 1) * W + (kw - 1)
                if off == 0:
                    taps.append(v)
                else:
                    shifted = pltpu.roll(v, (-off) % HW, axis=1)
                    taps.append(shifted * tmask[mi:mi + 1, :])
                    mi += 1
        stacked = jnp.concatenate(taps, axis=0).astype(w_folded.dtype)
        return jnp.dot(w_folded, stacked, preferred_element_type=jnp.float32)

    def inorm(v):
        # Per-(sample, channel) stats over space (lanes); two-pass variance.
        mean = jnp.mean(v, axis=1, keepdims=True)
        d = v - mean
        var = jnp.mean(d * d, axis=1, keepdims=True)
        return d * jax.lax.rsqrt(var + IN_EPS)

    def process_group(gi):
        static = isinstance(gi, int)
        r0 = gi * gcin
        w0 = gi * gcout
        if not static:
            if gcin % 8 == 0:
                r0 = pl.multiple_of(r0, 8)
            if gcout % 8 == 0:
                w0 = pl.multiple_of(w0, 8)

        x = x_ref[pl.ds(r0, gcin), :]           # (g*Cin, HW) compute dtype
        xf = x.astype(jnp.float32)

        # Reference module discards F.instance_norm(x) here (w=None path).
        out = _selu(xf).astype(w1.dtype)

        # conv1 (1x1): Cin -> Ct
        out = jnp.dot(w1, out, preferred_element_type=jnp.float32)
        out = _selu(inorm(out))

        # conv2 / conv3 (3x3): Ct -> Ct, one folded matmul each
        out = conv3x3(out, w2)
        out = _selu(inorm(out))
        out = conv3x3(out, w3)
        out = _selu(inorm(out))

        # conv4 (1x1): Ct -> Cout
        out = jnp.dot(w4, out.astype(w4.dtype),
                      preferred_element_type=jnp.float32)

        # Residual branch last (x still at hand) to keep its (g*Cout, HW) f32
        # value out of the live set across the conv stack.
        residual = _selu(jnp.dot(wada, x, preferred_element_type=jnp.float32))

        o_ref[pl.ds(w0, gcout), :] = (out + residual).astype(o_ref.dtype)

    if n_groups <= 4:
        for gi in range(n_groups):              # small: full static unroll
            process_group(gi)
    else:
        def body(gi, carry):                    # bounded live ranges
            process_group(gi)
            return carry
        jax.lax.fori_loop(0, n_groups, body, 0, unroll=2)


# --------------------- host-side weight / mask plumbing ---------------------

def _blockdiag_1x1(w_oihw, g):
    w2d = w_oihw[:, :, 0, 0] if w_oihw.ndim == 4 else w_oihw
    return jnp.kron(jnp.eye(g, dtype=w2d.dtype), w2d)


def _blockdiag_fold_3x3(w_oihw, g):
    # (O, I, 3, 3) OIHW -> (g*O, 9*g*I); K index = tap*(g*I) + n*I + ci.
    eye = jnp.eye(g, dtype=w_oihw.dtype)
    blocks = [jnp.kron(eye, w_oihw[:, :, kh, kw])
              for kh in range(3) for kw in range(3)]
    return jnp.concatenate(blocks, axis=1)


def _make_tap_masks(H, W):
    # (8, H*W) 0/1 validity masks for the 8 non-center taps of a SAME 3x3 conv.
    s = jnp.arange(H * W)
    h, w = s // W, s % W
    rows = []
    for kh in range(3):
        for kw in range(3):
            dh, dw = kh - 1, kw - 1
            if dh == 0 and dw == 0:
                continue
            rows.append((h + dh >= 0) & (h + dh < H) &
                        (w + dw >= 0) & (w + dw < W))
    return jnp.stack(rows, axis=0).astype(jnp.float32)


def _tensorcores_per_chip():
    # v4 / v5p / v7x expose 2 TensorCores per chip (megacore); v5e / v6e: 1.
    try:
        kind = jax.devices()[0].device_kind.lower()
    except Exception:
        return 1
    return 2 if any(t in kind for t in ("v7", "v5p", "v4")) else 1


def _largest_divisor_leq(n, cap):
    for d in range(min(cap, n), 0, -1):
        if n % d == 0:
            return d
    return 1


def _pick_samples_per_step(N, g, per_sample_block_bytes,
                           block_budget_bytes=8 << 20):
    # As few grid steps as possible: 1 per TensorCore (v5e/v6e -> one big step,
    # v4/v5p/v7x -> 2 steps for megacore sharding), capped so the
    # double-buffered in+out blocks stay far inside VMEM on every generation.
    target_steps = _tensorcores_per_chip()
    cap = max(g, block_budget_bytes // max(1, per_sample_block_bytes))
    desired = min(N, cap, max(g, -(-N // target_steps)))
    best = g
    for m in range(g, desired + 1, g):
        if N % m == 0:
            best = m
    return best


# ------------------------------ wrapper --------------------------------------

def big_residual_block(x_nchw, wada, w1, w2, w3, w4, *,
                       compute_dtype=jnp.bfloat16, out_dtype=None,
                       samples_per_step=None):
    """BigResidualBlock forward (w=None / b=None path).  NCHW in, NCHW out.

    Weights are PyTorch OIHW layout (already spectral-normalised).
    compute_dtype=bfloat16 (default) halves DMA bytes and doubles MXU rate on
    v6e/v7x; accumulation / SELU / instance-norm stats stay float32.  Use
    compute_dtype=out_dtype=float32 for tight-precision validation.
    """
    N, Cin, H, W = x_nchw.shape
    Cout, Ct = wada.shape[0], w1.shape[0]
    HW = H * W
    out_dtype = compute_dtype if out_dtype is None else out_dtype
    cd = jnp.dtype(compute_dtype)

    # Group size: enough samples per group to fill the 8 f32 sublanes of a
    # vreg on the temp-channel (Ct) stages; must divide N.
    g = _largest_divisor_leq(N, max(1, -(-8 // Ct)))

    if samples_per_step is None:
        per_sample = 2 * HW * (Cin * cd.itemsize
                               + Cout * jnp.dtype(out_dtype).itemsize)
        nb = _pick_samples_per_step(N, g, per_sample)
    else:
        nb = int(samples_per_step)
    assert N % nb == 0 and nb % g == 0
    if (N // nb) > 1 and ((nb * Cin) % 8 or (nb * Cout) % 8):
        nb = N                    # one full-batch block is always layout-legal

    # Host-side (free) layout plumbing: (N, C, H, W) -> (N*C, HW) slabs.
    x = x_nchw.reshape(N * Cin, HW).astype(cd)

    wada_g = _blockdiag_1x1(wada.astype(jnp.float32), g).astype(cd)
    w1_g = _blockdiag_1x1(w1.astype(jnp.float32), g).astype(cd)
    w2_g = _blockdiag_fold_3x3(w2.astype(jnp.float32), g).astype(cd)
    w3_g = _blockdiag_fold_3x3(w3.astype(jnp.float32), g).astype(cd)
    w4_g = _blockdiag_1x1(w4.astype(jnp.float32), g).astype(cd)
    tmask = _make_tap_masks(H, W)                     # (8, HW) float32

    kernel = functools.partial(big_res_block_kernel, H=H, W=W)
    full = lambda i: (0, 0)

    out = pl.pallas_call(
        kernel,
        out_shape=jax.ShapeDtypeStruct((N * Cout, HW), out_dtype),
        grid=(N // nb,),
        in_specs=[
            pl.BlockSpec(tmask.shape, full),
            pl.BlockSpec((nb * Cin, HW), lambda i: (i, 0)),
            pl.BlockSpec(wada_g.shape, full),
            pl.BlockSpec(w1_g.shape, full),
            pl.BlockSpec(w2_g.shape, full),
            pl.BlockSpec(w3_g.shape, full),
            pl.BlockSpec(w4_g.shape, full),
        ],
        out_specs=pl.BlockSpec((nb * Cout, HW), lambda i: (i, 0)),
        compiler_params=pltpu.CompilerParams(
            dimension_semantics=("parallel",),
            vmem_limit_bytes=32 * 1024 * 1024),
    )(tmask, x, wada_g, w1_g, w2_g, w3_g, w4_g)
    return out.reshape(N, Cout, H, W)


# ----------------------- parameter construction -----------------------------

def _spectral_normalize(w_oihw):
    # PyTorch spectral_norm: divide by the top singular value of the weight
    # reshaped to (out_channels, -1).  Converged power iteration.
    o = w_oihw.shape[0]
    mat = w_oihw.reshape(o, -1)
    v = jnp.ones((mat.shape[1],), jnp.float32) / jnp.sqrt(float(mat.shape[1]))
    for _ in range(50):
        u = mat @ v
        u = u / (jnp.linalg.norm(u) + 1e-12)
        v = mat.T @ u
        v = v / (jnp.linalg.norm(v) + 1e-12)
    sigma = u @ (mat @ v)
    return w_oihw / sigma


def init_params(key, in_channels, out_channels):
    temp = max(1, in_channels // 4)
    ks = jax.random.split(key, 5)
    mk = lambda k, shape: _spectral_normalize(
        0.3 * jax.random.normal(k, shape, jnp.float32))
    wada = mk(ks[0], (out_channels, in_channels, 1, 1))
    w1 = mk(ks[1], (temp, in_channels, 1, 1))
    w2 = mk(ks[2], (temp, temp, 3, 3))
    w3 = mk(ks[3], (temp, temp, 3, 3))
    w4 = mk(ks[4], (out_channels, temp, 1, 1))
    return wada, w1, w2, w3, w4


# --------------------------- pure-JAX reference ------------------------------

def reference_forward(x_nchw, wada, w1, w2, w3, w4):
    x = jnp.transpose(x_nchw, (0, 2, 3, 1)).astype(jnp.float32)   # NHWC

    def inorm(v):
        mean = jnp.mean(v, axis=(1, 2), keepdims=True)
        var = jnp.mean((v - mean) ** 2, axis=(1, 2), keepdims=True)
        return (v - mean) * jax.lax.rsqrt(var + IN_EPS)

    def conv1x1(v, w_oihw):
        return jnp.einsum('nhwc,oc->nhwo', v, w_oihw[:, :, 0, 0])

    def conv3(v, w_oihw):                      # OIHW -> HWIO
        w_hwio = jnp.transpose(w_oihw, (2, 3, 1, 0))
        return jax.lax.conv_general_dilated(
            v, w_hwio, (1, 1), 'SAME',
            dimension_numbers=('NHWC', 'HWIO', 'NHWC'))

    residual = _selu(conv1x1(x, wada))
    out = _selu(x)                             # instance_norm(x) discarded
    out = conv1x1(out, w1)
    out = _selu(inorm(out))
    out = conv3(out, w2)
    out = _selu(inorm(out))
    out = conv3(out, w3)
    out = _selu(inorm(out))
    out = conv1x1(out, w4)
    out = out + residual
    return jnp.transpose(out, (0, 3, 1, 2))


if __name__ == "__main__":
    key = jax.random.PRNGKey(0)
    kx, kp, kx2 = jax.random.split(key, 3)

    N, Cin, Cout, H, W = 2, 16, 16, 16, 16     # temp_channels = 4, H*W = 256
    x = jax.random.normal(kx, (N, Cin, H, W), jnp.float32)
    params = init_params(kp, Cin, Cout)
    ref = reference_forward(x, *params)

    # f32 path: validates the folded-tap / block-diagonal math tightly.
    out_f32 = jax.block_until_ready(
        big_residual_block(x, *params, compute_dtype=jnp.float32,
                           out_dtype=jnp.float32))
    assert out_f32.shape == (N, Cout, H, W)
    err_f32 = float(jnp.max(jnp.abs(out_f32 - ref)))
    if not bool(jnp.allclose(out_f32, ref, atol=5e-3, rtol=5e-3)):
        raise AssertionError(f"f32 kernel mismatch, max abs err={err_f32}")

    # Default bf16 path (bf16 DMA in/out, f32 accumulation + stats inside).
    out_bf16 = jax.block_until_ready(big_residual_block(x, *params))
    rel = float(jnp.linalg.norm(out_bf16.astype(jnp.float32) - ref)
                / (jnp.linalg.norm(ref) + 1e-12))
    if rel > 8e-2:
        raise AssertionError(f"bf16 kernel mismatch, rel err={rel}")

    # Larger batch in a single grid step: exercises the multi-group
    # lax.fori_loop path inside the kernel.
    N2 = 16
    x2 = jax.random.normal(kx2, (N2, Cin, H, W), jnp.float32)
    ref2 = reference_forward(x2, *params)
    out2 = jax.block_until_ready(
        big_residual_block(x2, *params, compute_dtype=jnp.float32,
                           out_dtype=jnp.float32, samples_per_step=16))
    err2 = float(jnp.max(jnp.abs(out2 - ref2)))
    if not bool(jnp.allclose(out2, ref2, atol=5e-3, rtol=5e-3)):
        raise AssertionError(f"fori-loop path mismatch, max abs err={err2}")

    print("KERNEL_OK")
</pallas_src>

<mosaic_0001>
module attributes {stable_mosaic.version = 11 : i64} {
  func.func @big_res_block_kernel(%arg0: i32, %arg1: memref<8x256xf32, #tpu.memory_space<vmem>>, %arg2: memref<32x256xf32, #tpu.memory_space<vmem>>, %arg3: memref<32x32xf32, #tpu.memory_space<vmem>>, %arg4: memref<8x32xf32, #tpu.memory_space<vmem>>, %arg5: memref<8x72xf32, #tpu.memory_space<vmem>>, %arg6: memref<8x72xf32, #tpu.memory_space<vmem>>, %arg7: memref<32x8xf32, #tpu.memory_space<vmem>>, %arg8: memref<32x256xf32, #tpu.memory_space<vmem>>) attributes {dimension_semantics = [#tpu.dimension_semantics<parallel>], iteration_bounds = array<i64: 1>, scalar_prefetch = 0 : i64, scratch_operands = 0 : i64, tpu.core_type = #tpu.core_type<tc>, window_params = [{pipeline_mode = #tpu.pipeline_mode<synchronous>, transform_indices = @transform_0, window_bounds = array<i64: 8, 256>}, {transform_indices = @transform_1, window_bounds = array<i64: 32, 256>}, {pipeline_mode = #tpu.pipeline_mode<synchronous>, transform_indices = @transform_2, window_bounds = array<i64: 32, 32>}, {pipeline_mode = #tpu.pipeline_mode<synchronous>, transform_indices = @transform_3, window_bounds = array<i64: 8, 32>}, {pipeline_mode = #tpu.pipeline_mode<synchronous>, transform_indices = @transform_4, window_bounds = array<i64: 8, 72>}, {pipeline_mode = #tpu.pipeline_mode<synchronous>, transform_indices = @transform_5, window_bounds = array<i64: 8, 72>}, {pipeline_mode = #tpu.pipeline_mode<synchronous>, transform_indices = @transform_6, window_bounds = array<i64: 32, 8>}, {transform_indices = @transform_7, window_bounds = array<i64: 32, 256>}]} {
    %c0 = arith.constant 0 : index
    %c0_0 = arith.constant 0 : index
    %0 = vector.load %arg3[%c0, %c0_0] : memref<32x32xf32, #tpu.memory_space<vmem>>, vector<32x32xf32>
    %c0_1 = arith.constant 0 : index
    %c0_2 = arith.constant 0 : index
    %1 = vector.load %arg4[%c0_1, %c0_2] : memref<8x32xf32, #tpu.memory_space<vmem>>, vector<8x32xf32>
    %c0_3 = arith.constant 0 : index
    %c0_4 = arith.constant 0 : index
    %2 = vector.load %arg5[%c0_3, %c0_4] : memref<8x72xf32, #tpu.memory_space<vmem>>, vector<8x72xf32>
    %c0_5 = arith.constant 0 : index
    %c0_6 = arith.constant 0 : index
    %3 = vector.load %arg6[%c0_5, %c0_6] : memref<8x72xf32, #tpu.memory_space<vmem>>, vector<8x72xf32>
    %c0_7 = arith.constant 0 : index
    %c0_8 = arith.constant 0 : index
    %4 = vector.load %arg7[%c0_7, %c0_8] : memref<32x8xf32, #tpu.memory_space<vmem>>, vector<32x8xf32>
    %c0_9 = arith.constant 0 : index
    %c0_10 = arith.constant 0 : index
    %5 = vector.load %arg1[%c0_9, %c0_10] : memref<8x256xf32, #tpu.memory_space<vmem>>, vector<8x256xf32>
    %c0_11 = arith.constant 0 : index
    %c0_12 = arith.constant 0 : index
    %6 = vector.load %arg2[%c0_11, %c0_12] : memref<32x256xf32, #tpu.memory_space<vmem>>, vector<32x256xf32>
    %cst = arith.constant 0.000000e+00 : f32
    %7 = vector.broadcast %cst : f32 to vector<32x256xf32>
    %8 = arith.cmpf ogt, %6, %7 : vector<32x256xf32>
    %9 = math.exp %6 : vector<32x256xf32>
    %cst_13 = arith.constant 1.000000e+00 : f32
    %10 = vector.broadcast %cst_13 : f32 to vector<32x256xf32>
    %11 = arith.subf %9, %10 : vector<32x256xf32>
    %cst_14 = arith.constant 1.67326319 : f32
    %12 = vector.broadcast %cst_14 : f32 to vector<32x256xf32>
    %13 = arith.mulf %12, %11 : vector<32x256xf32>
    %14 = arith.select %8, %6, %13 : vector<32x256xi1>, vector<32x256xf32>
    %cst_15 = arith.constant 1.05070102 : f32
    %15 = vector.broadcast %cst_15 : f32 to vector<32x256xf32>
    %16 = arith.mulf %15, %14 : vector<32x256xf32>
    %cst_16 = arith.constant dense<0.000000e+00> : vector<8x256xf32>
    %17 = tpu.matmul %1, %16, %cst_16 {dimension_numbers = #tpu.dot_dimension_numbers<[1], [0], [0], [1], [0, 0, 1, 1], [], []>} : vector<8x32xf32>, vector<32x256xf32>, vector<8x256xf32> -> vector<8x256xf32>
    %cst_17 = arith.constant dense<0.000000e+00> : vector<8xf32>
    %18 = vector.multi_reduction <add>, %17, %cst_17 [1] : vector<8x256xf32> to vector<8xf32>
    %19 = vector.shape_cast %18 : vector<8xf32> to vector<8x1xf32>
    %cst_18 = arith.constant 2.560000e+02 : f32
    %20 = vector.broadcast %cst_18 : f32 to vector<8x1xf32>
    %21 = arith.divf %19, %20 : vector<8x1xf32>
    %22 = vector.broadcast %21 : vector<8x1xf32> to vector<8x256xf32>
    %23 = arith.subf %17, %22 : vector<8x256xf32>
    %24 = arith.mulf %23, %23 : vector<8x256xf32>
    %cst_19 = arith.constant dense<0.000000e+00> : vector<8xf32>
    %25 = vector.multi_reduction <add>, %24, %cst_19 [1] : vector<8x256xf32> to vector<8xf32>
    %26 = vector.shape_cast %25 : vector<8xf32> to vector<8x1xf32>
    %cst_20 = arith.constant 2.560000e+02 : f32
    %27 = vector.broadcast %cst_20 : f32 to vector<8x1xf32>
    %28 = arith.divf %26, %27 : vector<8x1xf32>
    %cst_21 = arith.constant 9.99999974E-6 : f32
    %29 = vector.broadcast %cst_21 : f32 to vector<8x1xf32>
    %30 = arith.addf %28, %29 : vector<8x1xf32>
    %31 = math.rsqrt %30 : vector<8x1xf32>
    %32 = vector.broadcast %31 : vector<8x1xf32> to vector<8x256xf32>
    %33 = arith.mulf %23, %32 : vector<8x256xf32>
    %cst_22 = arith.constant 0.000000e+00 : f32
    %34 = vector.broadcast %cst_22 : f32 to vector<8x256xf32>
    %35 = arith.cmpf ogt, %33, %34 : vector<8x256xf32>
    %36 = math.exp %33 : vector<8x256xf32>
    %cst_23 = arith.constant 1.000000e+00 : f32
    %37 = vector.broadcast %cst_23 : f32 to vector<8x256xf32>
    %38 = arith.subf %36, %37 : vector<8x256xf32>
    %cst_24 = arith.constant 1.67326319 : f32
    %39 = vector.broadcast %cst_24 : f32 to vector<8x256xf32>
    %40 = arith.mulf %39, %38 : vector<8x256xf32>
    %41 = arith.select %35, %33, %40 : vector<8x256xi1>, vector<8x256xf32>
    %cst_25 = arith.constant 1.05070102 : f32
    %42 = vector.broadcast %cst_25 : f32 to vector<8x256xf32>
    %43 = arith.mulf %42, %41 : vector<8x256xf32>
    %c17_i32 = arith.constant 17 : i32
    %44 = tpu.dynamic_rotate %43 by %c17_i32 dim 1 : vector<8x256xf32>, i32 -> vector<8x256xf32>
    %45 = vector.extract_strided_slice %5 {offsets = [0, 0], sizes = [1, 256], strides = [1, 1]} : vector<8x256xf32> to vector<1x256xf32>
    %46 = vector.broadcast %45 : vector<1x256xf32> to vector<8x256xf32>
    %47 = arith.mulf %44, %46 : vector<8x256xf32>
    %c16_i32 = arith.constant 16 : i32
    %48 = tpu.dynamic_rotate %43 by %c16_i32 dim 1 : vector<8x256xf32>, i32 -> vector<8x256xf32>
    %49 = vector.extract_strided_slice %5 {offsets = [1, 0], sizes = [1, 256], strides = [1, 1]} : vector<8x256xf32> to vector<1x256xf32>
    %50 = vector.broadcast %49 : vector<1x256xf32> to vector<8x256xf32>
    %51 = arith.mulf %48, %50 : vector<8x256xf32>
    %c15_i32 = arith.constant 15 : i32
    %52 = tpu.dynamic_rotate %43 by %c15_i32 dim 1 : vector<8x256xf32>, i32 -> vector<8x256xf32>
    %53 = vector.extract_strided_slice %5 {offsets = [2, 0], sizes = [1, 256], strides = [1, 1]} : vector<8x256xf32> to vector<1x256xf32>
    %54 = vector.broadcast %53 : vector<1x256xf32> to vector<8x256xf32>
    %55 = arith.mulf %52, %54 : vector<8x256xf32>
    %c1_i32 = arith.constant 1 : i32
    %56 = tpu.dynamic_rotate %43 by %c1_i32 dim 1 : vector<8x256xf32>, i32 -> vector<8x256xf32>
    %57 = vector.extract_strided_slice %5 {offsets = [3, 0], sizes = [1, 256], strides = [1, 1]} : vector<8x256xf32> to vector<1x256xf32>
    %58 = vector.broadcast %57 : vector<1x256xf32> to vector<8x256xf32>
    %59 = arith.mulf %56, %58 : vector<8x256xf32>
    %c255_i32 = arith.constant 255 : i32
    %60 = tpu.dynamic_rotate %43 by %c255_i32 dim 1 : vector<8x256xf32>, i32 -> vector<8x256xf32>
    %61 = vector.extract_strided_slice %5 {offsets = [4, 0], sizes = [1, 256], strides = [1, 1]} : vector<8x256xf32> to vector<1x256xf32>
    %62 = vector.broadcast %61 : vector<1x256xf32> to vector<8x256xf32>
    %63 = arith.mulf %60, %62 : vector<8x256xf32>
    %c241_i32 = arith.constant 241 : i32
    %64 = tpu.dynamic_rotate %43 by %c241_i32 dim 1 : vector<8x256xf32>, i32 -> vector<8x256xf32>
    %65 = vector.extract_strided_slice %5 {offsets = [5, 0], sizes = [1, 256], strides = [1, 1]} : vector<8x256xf32> to vector<1x256xf32>
    %66 = vector.broadcast %65 : vector<1x256xf32> to vector<8x256xf32>
    %67 = arith.mulf %64, %66 : vector<8x256xf32>
    %c240_i32 = arith.constant 240 : i32
    %68 = tpu.dynamic_rotate %43 by %c240_i32 dim 1 : vector<8x256xf32>, i32 -> vector<8x256xf32>
    %69 = vector.extract_strided_slice %5 {offsets = [6, 0], sizes = [1, 256], strides = [1, 1]} : vector<8x256xf32> to vector<1x256xf32>
    %70 = vector.broadcast %69 : vector<1x256xf32> to vector<8x256xf32>
    %71 = arith.mulf %68, %70 : vector<8x256xf32>
    %c239_i32 = arith.constant 239 : i32
    %72 = tpu.dynamic_rotate %43 by %c239_i32 dim 1 : vector<8x256xf32>, i32 -> vector<8x256xf32>
    %73 = vector.extract_strided_slice %5 {offsets = [7, 0], sizes = [1, 256], strides = [1, 1]} : vector<8x256xf32> to vector<1x256xf32>
    %74 = vector.broadcast %73 : vector<1x256xf32> to vector<8x256xf32>
    %75 = arith.mulf %72, %74 : vector<8x256xf32>
    %76 = tpu.concatenate %47, %51, %55, %59, %43, %63, %67, %71, %75 in 0 : vector<8x256xf32>, vector<8x256xf32>, vector<8x256xf32>, vector<8x256xf32>, vector<8x256xf32>, vector<8x256xf32>, vector<8x256xf32>, vector<8x256xf32>, vector<8x256xf32> -> vector<72x256xf32>
    %cst_26 = arith.constant dense<0.000000e+00> : vector<8x256xf32>
    %77 = tpu.matmul %2, %76, %cst_26 {dimension_numbers = #tpu.dot_dimension_numbers<[1], [0], [0], [1], [0, 0, 1, 1], [], []>} : vector<8x72xf32>, vector<72x256xf32>, vector<8x256xf32> -> vector<8x256xf32>
    %cst_27 = arith.constant dense<0.000000e+00> : vector<8xf32>
    %78 = vector.multi_reduction <add>, %77, %cst_27 [1] : vector<8x256xf32> to vector<8xf32>
    %79 = vector.shape_cast %78 : vector<8xf32> to vector<8x1xf32>
    %cst_28 = arith.constant 2.560000e+02 : f32
    %80 = vector.broadcast %cst_28 : f32 to vector<8x1xf32>
    %81 = arith.divf %79, %80 : vector<8x1xf32>
    %82 = vector.broadcast %81 : vector<8x1xf32> to vector<8x256xf32>
    %83 = arith.subf %77, %82 : vector<8x256xf32>
    %84 = arith.mulf %83, %83 : vector<8x256xf32>
    %cst_29 = arith.constant dense<0.000000e+00> : vector<8xf32>
    %85 = vector.multi_reduction <add>, %84, %cst_29 [1] : vector<8x256xf32> to vector<8xf32>
    %86 = vector.shape_cast %85 : vector<8xf32> to vector<8x1xf32>
    %cst_30 = arith.constant 2.560000e+02 : f32
    %87 = vector.broadcast %cst_30 : f32 to vector<8x1xf32>
    %88 = arith.divf %86, %87 : vector<8x1xf32>
    %cst_31 = arith.constant 9.99999974E-6 : f32
    %89 = vector.broadcast %cst_31 : f32 to vector<8x1xf32>
    %90 = arith.addf %88, %89 : vector<8x1xf32>
    %91 = math.rsqrt %90 : vector<8x1xf32>
    %92 = vector.broadcast %91 : vector<8x1xf32> to vector<8x256xf32>
    %93 = arith.mulf %83, %92 : vector<8x256xf32>
    %cst_32 = arith.constant 0.000000e+00 : f32
    %94 = vector.broadcast %cst_32 : f32 to vector<8x256xf32>
    %95 = arith.cmpf ogt, %93, %94 : vector<8x256xf32>
    %96 = math.exp %93 : vector<8x256xf32>
    %cst_33 = arith.constant 1.000000e+00 : f32
    %97 = vector.broadcast %cst_33 : f32 to vector<8x256xf32>
    %98 = arith.subf %96, %97 : vector<8x256xf32>
    %cst_34 = arith.constant 1.67326319 : f32
    %99 = vector.broadcast %cst_34 : f32 to vector<8x256xf32>
    %100 = arith.mulf %99, %98 : vector<8x256xf32>
    %101 = arith.select %95, %93, %100 : vector<8x256xi1>, vector<8x256xf32>
    %cst_35 = arith.constant 1.05070102 : f32
    %102 = vector.broadcast %cst_35 : f32 to vector<8x256xf32>
    %103 = arith.mulf %102, %101 : vector<8x256xf32>
    %c17_i32_36 = arith.constant 17 : i32
    %104 = tpu.dynamic_rotate %103 by %c17_i32_36 dim 1 : vector<8x256xf32>, i32 -> vector<8x256xf32>
    %105 = vector.extract_strided_slice %5 {offsets = [0, 0], sizes = [1, 256], strides = [1, 1]} : vector<8x256xf32> to vector<1x256xf32>
    %106 = vector.broadcast %105 : vector<1x256xf32> to vector<8x256xf32>
    %107 = arith.mulf %104, %106 : vector<8x256xf32>
    %c16_i32_37 = arith.constant 16 : i32
    %108 = tpu.dynamic_rotate %103 by %c16_i32_37 dim 1 : vector<8x256xf32>, i32 -> vector<8x256xf32>
    %109 = vector.extract_strided_slice %5 {offsets = [1, 0], sizes = [1, 256], strides = [1, 1]} : vector<8x256xf32> to vector<1x256xf32>
    %110 = vector.broadcast %109 : vector<1x256xf32> to vector<8x256xf32>
    %111 = arith.mulf %108, %110 : vector<8x256xf32>
    %c15_i32_38 = arith.constant 15 : i32
    %112 = tpu.dynamic_rotate %103 by %c15_i32_38 dim 1 : vector<8x256xf32>, i32 -> vector<8x256xf32>
    %113 = vector.extract_strided_slice %5 {offsets = [2, 0], sizes = [1, 256], strides = [1, 1]} : vector<8x256xf32> to vector<1x256xf32>
    %114 = vector.broadcast %113 : vector<1x256xf32> to vector<8x256xf32>
    %115 = arith.mulf %112, %114 : vector<8x256xf32>
    %c1_i32_39 = arith.constant 1 : i32
    %116 = tpu.dynamic_rotate %103 by %c1_i32_39 dim 1 : vector<8x256xf32>, i32 -> vector<8x256xf32>
    %117 = vector.extract_strided_slice %5 {offsets = [3, 0], sizes = [1, 256], strides = [1, 1]} : vector<8x256xf32> to vector<1x256xf32>
    %118 = vector.broadcast %117 : vector<1x256xf32> to vector<8x256xf32>
    %119 = arith.mulf %116, %118 : vector<8x256xf32>
    %c255_i32_40 = arith.constant 255 : i32
    %120 = tpu.dynamic_rotate %103 by %c255_i32_40 dim 1 : vector<8x256xf32>, i32 -> vector<8x256xf32>
    %121 = vector.extract_strided_slice %5 {offsets = [4, 0], sizes = [1, 256], strides = [1, 1]} : vector<8x256xf32> to vector<1x256xf32>
    %122 = vector.broadcast %121 : vector<1x256xf32> to vector<8x256xf32>
    %123 = arith.mulf %120, %122 : vector<8x256xf32>
    %c241_i32_41 = arith.constant 241 : i32
    %124 = tpu.dynamic_rotate %103 by %c241_i32_41 dim 1 : vector<8x256xf32>, i32 -> vector<8x256xf32>
    %125 = vector.extract_strided_slice %5 {offsets = [5, 0], sizes = [1, 256], strides = [1, 1]} : vector<8x256xf32> to vector<1x256xf32>
    %126 = vector.broadcast %125 : vector<1x256xf32> to vector<8x256xf32>
    %127 = arith.mulf %124, %126 : vector<8x256xf32>
    %c240_i32_42 = arith.constant 240 : i32
    %128 = tpu.dynamic_rotate %103 by %c240_i32_42 dim 1 : vector<8x256xf32>, i32 -> vector<8x256xf32>
    %129 = vector.extract_strided_slice %5 {offsets = [6, 0], sizes = [1, 256], strides = [1, 1]} : vector<8x256xf32> to vector<1x256xf32>
    %130 = vector.broadcast %129 : vector<1x256xf32> to vector<8x256xf32>
    %131 = arith.mulf %128, %130 : vector<8x256xf32>
    %c239_i32_43 = arith.constant 239 : i32
    %132 = tpu.dynamic_rotate %103 by %c239_i32_43 dim 1 : vector<8x256xf32>, i32 -> vector<8x256xf32>
    %133 = vector.extract_strided_slice %5 {offsets = [7, 0], sizes = [1, 256], strides = [1, 1]} : vector<8x256xf32> to vector<1x256xf32>
    %134 = vector.broadcast %133 : vector<1x256xf32> to vector<8x256xf32>
    %135 = arith.mulf %132, %134 : vector<8x256xf32>
    %136 = tpu.concatenate %107, %111, %115, %119, %103, %123, %127, %131, %135 in 0 : vector<8x256xf32>, vector<8x256xf32>, vector<8x256xf32>, vector<8x256xf32>, vector<8x256xf32>, vector<8x256xf32>, vector<8x256xf32>, vector<8x256xf32>, vector<8x256xf32> -> vector<72x256xf32>
    %cst_44 = arith.constant dense<0.000000e+00> : vector<8x256xf32>
    %137 = tpu.matmul %3, %136, %cst_44 {dimension_numbers = #tpu.dot_dimension_numbers<[1], [0], [0], [1], [0, 0, 1, 1], [], []>} : vector<8x72xf32>, vector<72x256xf32>, vector<8x256xf32> -> vector<8x256xf32>
    %cst_45 = arith.constant dense<0.000000e+00> : vector<8xf32>
    %138 = vector.multi_reduction <add>, %137, %cst_45 [1] : vector<8x256xf32> to vector<8xf32>
    %139 = vector.shape_cast %138 : vector<8xf32> to vector<8x1xf32>
    %cst_46 = arith.constant 2.560000e+02 : f32
    %140 = vector.broadcast %cst_46 : f32 to vector<8x1xf32>
    %141 = arith.divf %139, %140 : vector<8x1xf32>
    %142 = vector.broadcast %141 : vector<8x1xf32> to vector<8x256xf32>
    %143 = arith.subf %137, %142 : vector<8x256xf32>
    %144 = arith.mulf %143, %143 : vector<8x256xf32>
    %cst_47 = arith.constant dense<0.000000e+00> : vector<8xf32>
    %145 = vector.multi_reduction <add>, %144, %cst_47 [1] : vector<8x256xf32> to vector<8xf32>
    %146 = vector.shape_cast %145 : vector<8xf32> to vector<8x1xf32>
    %cst_48 = arith.constant 2.560000e+02 : f32
    %147 = vector.broadcast %cst_48 : f32 to vector<8x1xf32>
    %148 = arith.divf %146, %147 : vector<8x1xf32>
    %cst_49 = arith.constant 9.99999974E-6 : f32
    %149 = vector.broadcast %cst_49 : f32 to vector<8x1xf32>
    %150 = arith.addf %148, %149 : vector<8x1xf32>
    %151 = math.rsqrt %150 : vector<8x1xf32>
    %152 = vector.broadcast %151 : vector<8x1xf32> to vector<8x256xf32>
    %153 = arith.mulf %143, %152 : vector<8x256xf32>
    %cst_50 = arith.constant 0.000000e+00 : f32
    %154 = vector.broadcast %cst_50 : f32 to vector<8x256xf32>
    %155 = arith.cmpf ogt, %153, %154 : vector<8x256xf32>
    %156 = math.exp %153 : vector<8x256xf32>
    %cst_51 = arith.constant 1.000000e+00 : f32
    %157 = vector.broadcast %cst_51 : f32 to vector<8x256xf32>
    %158 = arith.subf %156, %157 : vector<8x256xf32>
    %cst_52 = arith.constant 1.67326319 : f32
    %159 = vector.broadcast %cst_52 : f32 to vector<8x256xf32>
    %160 = arith.mulf %159, %158 : vector<8x256xf32>
    %161 = arith.select %155, %153, %160 : vector<8x256xi1>, vector<8x256xf32>
    %cst_53 = arith.constant 1.05070102 : f32
    %162 = vector.broadcast %cst_53 : f32 to vector<8x256xf32>
    %163 = arith.mulf %162, %161 : vector<8x256xf32>
    %cst_54 = arith.constant dense<0.000000e+00> : vector<32x256xf32>
    %164 = tpu.matmul %4, %163, %cst_54 {dimension_numbers = #tpu.dot_dimension_numbers<[1], [0], [0], [1], [0, 0, 1, 1], [], []>} : vector<32x8xf32>, vector<8x256xf32>, vector<32x256xf32> -> vector<32x256xf32>
    %cst_55 = arith.constant dense<0.000000e+00> : vector<32x256xf32>
    %165 = tpu.matmul %0, %6, %cst_55 {dimension_numbers = #tpu.dot_dimension_numbers<[1], [0], [0], [1], [0, 0, 1, 1], [], []>} : vector<32x32xf32>, vector<32x256xf32>, vector<32x256xf32> -> vector<32x256xf32>
    %cst_56 = arith.constant 0.000000e+00 : f32
    %166 = vector.broadcast %cst_56 : f32 to vector<32x256xf32>
    %167 = arith.cmpf ogt, %165, %166 : vector<32x256xf32>
    %168 = math.exp %165 : vector<32x256xf32>
    %cst_57 = arith.constant 1.000000e+00 : f32
    %169 = vector.broadcast %cst_57 : f32 to vector<32x256xf32>
    %170 = arith.subf %168, %169 : vector<32x256xf32>
    %cst_58 = arith.constant 1.67326319 : f32
    %171 = vector.broadcast %cst_58 : f32 to vector<32x256xf32>
    %172 = arith.mulf %171, %170 : vector<32x256xf32>
    %173 = arith.select %167, %165, %172 : vector<32x256xi1>, vector<32x256xf32>
    %cst_59 = arith.constant 1.05070102 : f32
    %174 = vector.broadcast %cst_59 : f32 to vector<32x256xf32>
    %175 = arith.mulf %174, %173 : vector<32x256xf32>
    %176 = arith.addf %164, %175 : vector<32x256xf32>
    %c0_60 = arith.constant 0 : index
    %c0_61 = arith.constant 0 : index
    %177 = vector.load %arg8[%c0_60, %c0_61] : memref<32x256xf32, #tpu.memory_space<vmem>>, vector<32x256xf32>
    tpu.vector_store %arg8[%c0_60, %c0_61], %176 {strides = array<i32>} : memref<32x256xf32, #tpu.memory_space<vmem>>, vector<32x256xf32>,
    return
  }
  func.func @transform_0(%arg0: i32) -> (i32, i32) {
    %c0_i32 = arith.constant 0 : i32
    %c0_i32_0 = arith.constant 0 : i32
    %c0_i32_1 = arith.constant 0 : i32
    return %c0_i32, %c0_i32_0 : i32, i32
  }
  func.func @transform_1(%arg0: i32) -> (i32, i32) {
    %c0_i32 = arith.constant 0 : i32
    %c0_i32_0 = arith.constant 0 : i32
    return %arg0, %c0_i32 : i32, i32
  }
  func.func @transform_2(%arg0: i32) -> (i32, i32) {
    %c0_i32 = arith.constant 0 : i32
    %c0_i32_0 = arith.constant 0 : i32
    %c0_i32_1 = arith.constant 0 : i32
    return %c0_i32, %c0_i32_0 : i32, i32
  }
  func.func @transform_3(%arg0: i32) -> (i32, i32) {
    %c0_i32 = arith.constant 0 : i32
    %c0_i32_0 = arith.constant 0 : i32
    %c0_i32_1 = arith.constant 0 : i32
    return %c0_i32, %c0_i32_0 : i32, i32
  }
  func.func @transform_4(%arg0: i32) -> (i32, i32) {
    %c0_i32 = arith.constant 0 : i32
    %c0_i32_0 = arith.constant 0 : i32
    %c0_i32_1 = arith.constant 0 : i32
    return %c0_i32, %c0_i32_0 : i32, i32
  }
  func.func @transform_5(%arg0: i32) -> (i32, i32) {
    %c0_i32 = arith.constant 0 : i32
    %c0_i32_0 = arith.constant 0 : i32
    %c0_i32_1 = arith.constant 0 : i32
    return %c0_i32, %c0_i32_0 : i32, i32
  }
  func.func @transform_6(%arg0: i32) -> (i32, i32) {
    %c0_i32 = arith.constant 0 : i32
    %c0_i32_0 = arith.constant 0 : i32
    %c0_i32_1 = arith.constant 0 : i32
    return %c0_i32, %c0_i32_0 : i32, i32
  }
  func.func @transform_7(%arg0: i32) -> (i32, i32) {
    %c0_i32 = arith.constant 0 : i32
    %c0_i32_0 = arith.constant 0 : i32
    return %arg0, %c0_i32 : i32, i32
  }
}

</mosaic_0001>

<llo_original>
// kernel: tpu_custom_call.1
$region0: #{tpu_custom_call.1}
  #allocation0 [shape = 'u32[]', space=smem, size = 0x4, offset = 0x4, fixed_abs, tag = 'smem constant byte address 0x4 - core index']
  #allocation1 [shape = 'u32[144,128]{1,0:T(1,128)}', space=vmem, size = 0x12000, scoped, tag = 'internal scratch']
  %s0 = inlined_call_operand.hbm [shape: f32[8,256], index: 0, kind: input, shape index: {}]
  %s1 = inlined_call_operand.hbm [shape: f32[32,256], index: 1, kind: input, shape index: {}]
  %s2 = inlined_call_operand.vmem [shape: f32[32,32], index: 2, kind: input, shape index: {}]
  %s3 = inlined_call_operand.vmem [shape: f32[8,32], index: 3, kind: input, shape index: {}]
  %s4 = inlined_call_operand.hbm [shape: f32[8,72], index: 4, kind: input, shape index: {}]
  %s5 = inlined_call_operand.hbm [shape: f32[8,72], index: 5, kind: input, shape index: {}]
  %s6 = inlined_call_operand.vmem [shape: f32[32,8], index: 6, kind: input, shape index: {}]
  %s7 = inlined_call_operand.hbm [shape: f32[32,256], index: 7, kind: output, shape index: {}]
  %s8 = sld [smem:[#allocation0]]
  $region54: #{tpu_custom_call.1} parent=0
    _
  %s10 = ssub.s32 1, %s8
  %s11 = scalar_select 0, %s10, %s8
  $region1: #{tpu_custom_call.1} parent=0
    #allocation2 [shape = 'u8[8192]{0}', space=vmem, size = 0x2000, scoped, tag = 'input window, operand 0, single buffered']
    #allocation3 [shape = 's32[1]{0}', space=sflag, size = 0x4, scoped, tag = 'scoped memory for tpu_custom_call.1']
    #allocation4 [shape = 's32[1]{0}', space=sflag, size = 0x4, scoped, tag = 'scoped memory for tpu_custom_call.1']
    #allocation5 [shape = 'u8[32768]{0}', space=vmem, size = 0x8000, scoped, tag = 'input window, operand 1, single buffered']
    #allocation6 [shape = 's32[1]{0}', space=sflag, size = 0x4, scoped, tag = 'scoped memory for tpu_custom_call.1']
    #allocation7 [shape = 'u8[4096]{0}', space=vmem, size = 0x1000, scoped, tag = 'input window, operand 4, single buffered']
    #allocation8 [shape = 'u8[4096]{0}', space=vmem, size = 0x1000, scoped, tag = 'input window, operand 5, single buffered']
    #allocation9 [shape = 's32[1]{0}', space=sflag, size = 0x4, scoped, tag = 'scoped memory for tpu_custom_call.1']
    #allocation10 [shape = 'u8[32768]{0}', space=vmem, size = 0x8000, scoped, tag = 'output window, operand 0, single buffered']
    %12 = vsyncpa [#allocation3], 0
    %13 = vsyncpa [#allocation6], 0
    %14 = vsyncpa [#allocation9], 0
    %15 = vsyncpa [#allocation4], 0
    // Predicated region
    $region2: #{tpu_custom_call.1} parent=1 // pred_check
      _
    $region3: #{tpu_custom_call.1} parent=1 // pred_check_branch
      %17 = sbr.rel (0) target = $region5
    $region4: #{tpu_custom_call.1} parent=1 // pred_region
      %s19 = ssub.s32 256, 256
      %20 = vsyncadd [#allocation3], %s19
      %s22 = sshll.u32 [#allocation2], 4
      %s23 = int_to_ptr.vmem [resolvable:$true] %s22
      %25 = dma.hbm_to_vmem [thread:$0]  %s0, 256, %s23, [#allocation3]
    $region5: #{tpu_custom_call.1} parent=1 // pred_fallthru
      _
    // Predicated region
    $region6: #{tpu_custom_call.1} parent=1 // pred_check
      _
    $region7: #{tpu_custom_call.1} parent=1 // pred_check_branch
      %27 = sbr.rel (0) target = $region9
    $region8: #{tpu_custom_call.1} parent=1 // pred_region
      %s29 = ssub.s32 1024, 1024
      %30 = vsyncadd [#allocation6], %s29
      %s31 = sshll.u32 [#allocation5], 4
      %s32 = int_to_ptr.vmem [resolvable:$true] %s31
      %37 = dma.hbm_to_vmem [thread:$0]  %s1, 1024, %s32, [#allocation6], 256, 256, 16
    $region9: #{tpu_custom_call.1} parent=1 // pred_fallthru
      _
    // Predicated region
    $region10: #{tpu_custom_call.1} parent=1 // pred_check
      _
    $region11: #{tpu_custom_call.1} parent=1 // pred_check_branch
      %39 = sbr.rel (0) target = $region13
    $region12: #{tpu_custom_call.1} parent=1 // pred_region
      _
    $region13: #{tpu_custom_call.1} parent=1 // pred_fallthru
      _
    // Predicated region
    $region14: #{tpu_custom_call.1} parent=1 // pred_check
      _
    $region15: #{tpu_custom_call.1} parent=1 // pred_check_branch
      %41 = sbr.rel (0) target = $region17
    $region16: #{tpu_custom_call.1} parent=1 // pred_region
      _
    $region17: #{tpu_custom_call.1} parent=1 // pred_fallthru
      _
    // Predicated region
    $region18: #{tpu_custom_call.1} parent=1 // pred_check
      _
    $region19: #{tpu_custom_call.1} parent=1 // pred_check_branch
      %43 = sbr.rel (0) target = $region21
    $region20: #{tpu_custom_call.1} parent=1 // pred_region
      %s45 = ssub.s32 128, 128
      %46 = vsyncadd [#allocation6], %s45
      %s48 = sshll.u32 [#allocation7], 4
      %s49 = int_to_ptr.vmem [resolvable:$true] %s48
      %51 = dma.hbm_to_vmem [thread:$0]  %s4, 128, %s49, [#allocation6]
    $region21: #{tpu_custom_call.1} parent=1 // pred_fallthru
      _
    // Predicated region
    $region22: #{tpu_custom_call.1} parent=1 // pred_check
      _
    $region23: #{tpu_custom_call.1} parent=1 // pred_check_branch
      %53 = sbr.rel (0) target = $region25
    $region24: #{tpu_custom_call.1} parent=1 // pred_region
      %s55 = ssub.s32 128, 128
      %56 = vsyncadd [#allocation9], %s55
      %s58 = sshll.u32 [#allocation8], 4
      %s59 = int_to_ptr.vmem [resolvable:$true] %s58
      %61 = dma.hbm_to_vmem [thread:$0]  %s5, 128, %s59, [#allocation9]
    $region25: #{tpu_custom_call.1} parent=1 // pred_fallthru
      _
    // Predicated region
    $region26: #{tpu_custom_call.1} parent=1 // pred_check
      _
    $region27: #{tpu_custom_call.1} parent=1 // pred_check_branch
      %63 = sbr.rel (0) target = $region29
    $region28: #{tpu_custom_call.1} parent=1 // pred_region
      _
    $region29: #{tpu_custom_call.1} parent=1 // pred_fallthru
      _
    // Predicated region
    $region30: #{tpu_custom_call.1} parent=1 // pred_check
      _
    $region31: #{tpu_custom_call.1} parent=1 // pred_check_branch
      %65 = sbr.rel (0) target = $region33
    $region32: #{tpu_custom_call.1} parent=1 // pred_region
      %66 = dma.done [#allocation3], 256
    $region33: #{tpu_custom_call.1} parent=1 // pred_fallthru
      _
    // Predicated region
    $region34: #{tpu_custom_call.1} parent=1 // pred_check
      _
    $region35: #{tpu_custom_call.1} parent=1 // pred_check_branch
      %68 = sbr.rel (0) target = $region37
    $region36: #{tpu_custom_call.1} parent=1 // pred_region
      %69 = dma.done [#allocation6], 1024
    $region37: #{tpu_custom_call.1} parent=1 // pred_fallthru
      _
    // Predicated region
    $region38: #{tpu_custom_call.1} parent=1 // pred_check
      _
    $region39: #{tpu_custom_call.1} parent=1 // pred_check_branch
      %71 = sbr.rel (0) target = $region41
    $region40: #{tpu_custom_call.1} parent=1 // pred_region
      %72 = dma.done [#allocation6], 128
    $region41: #{tpu_custom_call.1} parent=1 // pred_fallthru
      _
    // Predicated region
    $region42: #{tpu_custom_call.1} parent=1 // pred_check
      _
    $region43: #{tpu_custom_call.1} parent=1 // pred_check_branch
      %74 = sbr.rel (0) target = $region45
    $region44: #{tpu_custom_call.1} parent=1 // pred_region
      %75 = dma.done [#allocation9], 128
    $region45: #{tpu_custom_call.1} parent=1 // pred_fallthru
      _
    %v76 = vld [vmem:[%s2] sm:$0xff]
    %v77 = vld [vmem:[%s2 + $0x8] sm:$0xff]
    %v78 = vld [vmem:[%s2 + $0x10] sm:$0xff]
    %v79 = vld [vmem:[%s2 + $0x18] sm:$0xff]
    %v80 = vld [vmem:[%s3] sm:$0xff]
    %v81 = vld [vmem:[#allocation7] sm:$0xff]
    %v82 = vld [vmem:[#allocation8] sm:$0xff]
    %v83 = vld [vmem:[%s6] sm:$0xff]
    %v84 = vld [vmem:[%s6 + $0x8] sm:$0xff]
    %v85 = vld [vmem:[%s6 + $0x10] sm:$0xff]
    %v86 = vld [vmem:[%s6 + $0x18] sm:$0xff]
    %v87 = vld [vmem:[#allocation2] sm:$0xff]
    %v88 = vld [vmem:[#allocation2 + $0x8] sm:$0xff]
    %v89 = vld [vmem:[#allocation5] sm:$0xff]
    %v90 = vld [vmem:[#allocation5 + $0x8] sm:$0xff]
    %v91 = vld [vmem:[#allocation5 + $0x10] sm:$0xff]
    %v92 = vld [vmem:[#allocation5 + $0x18] sm:$0xff]
    %v93 = vld [vmem:[#allocation5 + $0x20] sm:$0xff]
    %v94 = vld [vmem:[#allocation5 + $0x28] sm:$0xff]
    %v95 = vld [vmem:[#allocation5 + $0x30] sm:$0xff]
    %v96 = vld [vmem:[#allocation5 + $0x38] sm:$0xff]
    %vm97 = vcmp.gt.f32.partialorder %v89, 0.0
    %vm98 = vcmp.gt.f32.partialorder %v90, 0.0
    %vm99 = vcmp.gt.f32.partialorder %v91, 0.0
    %vm100 = vcmp.gt.f32.partialorder %v92, 0.0
    %vm101 = vcmp.gt.f32.partialorder %v93, 0.0
    %vm102 = vcmp.gt.f32.partialorder %v94, 0.0
    %vm103 = vcmp.gt.f32.partialorder %v95, 0.0
    %vm104 = vcmp.gt.f32.partialorder %v96, 0.0
    %v105 = vmul.f32 %v89, 1.442695
    %v106 = vpow.pop %v105
    %v107 = vmul.f32 %v90, 1.442695
    %v108 = vpow.pop %v107
    %v109 = vmul.f32 %v91, 1.442695
    %v110 = vpow.pop %v109
    %v111 = vmul.f32 %v92, 1.442695
    %v112 = vpow.pop %v111
    %v113 = vmul.f32 %v93, 1.442695
    %v114 = vpow.pop %v113
    %v115 = vmul.f32 %v94, 1.442695
    %v116 = vpow.pop %v115
    %v117 = vmul.f32 %v95, 1.442695
    %v118 = vpow.pop %v117
    %v119 = vmul.f32 %v96, 1.442695
    %v120 = vpow.pop %v119
    %v121 = vsub.f32 %v106, 1.0
    %v122 = vsub.f32 %v108, 1.0
    %v123 = vsub.f32 %v110, 1.0
    %v124 = vsub.f32 %v112, 1.0
    %v125 = vsub.f32 %v114, 1.0
    %v126 = vsub.f32 %v116, 1.0
    %v127 = vsub.f32 %v118, 1.0
    %v128 = vsub.f32 %v120, 1.0
    %v129 = vmul.f32 %v121, 1.6732632
    %v130 = vmul.f32 %v122, 1.6732632
    %v131 = vmul.f32 %v123, 1.6732632
    %v132 = vmul.f32 %v124, 1.6732632
    %v133 = vmul.f32 %v125, 1.6732632
    %v134 = vmul.f32 %v126, 1.6732632
    %v135 = vmul.f32 %v127, 1.6732632
    %v136 = vmul.f32 %v128, 1.6732632
    %v137 = vsel %vm97, %v89, %v129
    %v138 = vsel %vm98, %v90, %v130
    %v139 = vsel %vm99, %v91, %v131
    %v140 = vsel %vm100, %v92, %v132
    %v141 = vsel %vm101, %v93, %v133
    %v142 = vsel %vm102, %v94, %v134
    %v143 = vsel %vm103, %v95, %v135
    %v144 = vsel %vm104, %v96, %v136
    %v145 = vmul.f32 %v137, 1.050701
    %v146 = vmul.f32 %v138, 1.050701
    %v147 = vmul.f32 %v139, 1.050701
    %v148 = vmul.f32 %v140, 1.050701
    %v149 = vmul.f32 %v141, 1.050701
    %v150 = vmul.f32 %v142, 1.050701
    %v151 = vmul.f32 %v143, 1.050701
    %v152 = vmul.f32 %v144, 1.050701
    %vm153 = vcmask 261120
    %v155 = vsel %vm153, %v80, 0
    %157 = vmatprep.subr.mxu0 0.0
    %158 = vmatpush1.msra.mxu0 0.0
    %159 = vmatprep.subr.mxu0 0.0
    %160 = vmatpush1.msra.mxu0 0.0
    %161 = vmatprep.subr.mxu0 0.0
    %162 = vmatpush1.msra.mxu0 0.0
    %163 = vmatprep.subr.mxu0 0.0
    %164 = vmatpush1.msra.mxu0 0.0
    %165 = vmatprep.subr.mxu0 0.0
    %166 = vmatpush1.msra.mxu0 0.0
    %167 = vmatprep.subr.mxu0 0.0
    %168 = vmatpush1.msra.mxu0 0.0
    %169 = vmatprep.subr.mxu0 0.0
    %170 = vmatpush1.msra.mxu0 0.0
    %171 = vmatprep.subr.mxu0 0.0
    %172 = vmatpush1.msra.mxu0 0.0
    %173 = vmatprep.subr.mxu0 0.0
    %174 = vmatpush1.msra.mxu0 0.0
    %175 = vmatprep.subr.mxu0 0.0
    %176 = vmatpush1.msra.mxu0 0.0
    %177 = vmatprep.subr.mxu0 0.0
    %178 = vmatpush1.msra.mxu0 0.0
    %179 = vmatprep.subr.mxu0 0.0
    %180 = vmatpush1.msra.mxu0 0.0
    %181 = vmatprep.subr.mxu0 %v152
    %182 = vmatpush1.msra.mxu0 %v151
    %183 = vmatprep.subr.mxu0 %v150
    %184 = vmatpush1.msra.mxu0 %v149
    %185 = vmatprep.subr.mxu0 %v148
    %186 = vmatpush1.msra.mxu0 %v147
    %187 = vmatprep.subr.mxu0 %v146
    %188 = vmatpush1.msra.mxu0 %v145
    %189 = vmatprep.subr.mxu0 0.0
    %190 = vmatpush2.msra.mxu0 0.0
    %191 = vmatprep.subr.mxu0 0.0
    %192 = vmatpush2.msra.mxu0 0.0
    %193 = vmatprep.subr.mxu0 0.0
    %194 = vmatpush2.msra.mxu0 0.0
    %195 = vmatprep.subr.mxu0 0.0
    %196 = vmatpush2.msra.mxu0 0.0
    %197 = vmatprep.subr.mxu0 0.0
    %198 = vmatpush2.msra.mxu0 0.0
    %199 = vmatprep.subr.mxu0 0.0
    %200 = vmatpush2.msra.mxu0 0.0
    %201 = vmatprep.subr.mxu0 0.0
    %202 = vmatpush2.msra.mxu0 0.0
    %203 = vmatprep.subr.mxu0 0.0
    %204 = vmatpush2.msra.mxu0 0.0
    %205 = vmatprep.subr.mxu0 0.0
    %206 = vmatpush2.msra.mxu0 0.0
    %207 = vmatprep.subr.mxu0 0.0
    %208 = vmatpush2.msra.mxu0 0.0
    %209 = vmatprep.subr.mxu0 0.0
    %210 = vmatpush2.msra.mxu0 0.0
    %211 = vmatprep.subr.mxu0 0.0
    %212 = vmatpush2.msra.mxu0 0.0
    %213 = vmatprep.subr.mxu0 0.0
    %214 = vmatpush2.msra.mxu0 0.0
    %215 = vmatprep.subr.mxu0 0.0
    %216 = vmatpush2.msra.mxu0 0.0
    %217 = vmatprep.subr.mxu0 0.0
    %218 = vmatpush2.msra.mxu0 0.0
    %219 = vmatprep.subr.mxu0 0.0
    %220 = vmatpush2.msra.mxu0 0.0
    %221 = vmatprep.mubr.f32.mxu0 0.0
    %222 = vmatmul.mubr.f32.gmra.mxu0 %v155
    %v223 = vpop.f32.mrf.mxu0
    %v224 = vadd.f32 0.0, %v223
    %v225 = vpop.f32.mrf.mxu0
    %v226 = vadd.f32 0.0, %v225
    %227 = vdwg.mxu0
    %v228 = vadd.f32 %v224, %v226
    %229 = vadd.xlane.f32.xlu0 %v228
    %v230 = vpop.xlane.xlu0 %229
    %v231 = vrcp.pop 256.0
    %v232 = vmul.f32 %v230, %v231
    %v233 = vsub.f32 %v224, %v232
    %v234 = vsub.f32 %v226, %v232
    %v235 = vmul.f32 %v233, %v233
    %v236 = vmul.f32 %v234, %v234
    %v237 = vadd.f32 %v235, %v236
    %238 = vadd.xlane.f32.xlu0 %v237
    %v239 = vpop.xlane.xlu0 %238
    %v240 = vmul.f32 %v239, %v231
    %v241 = vadd.f32 %v240, 1e-05
    %v242 = vrsqrt.pop %v241
    %v243 = vmul.f32 %v233, %v242
    %v244 = vmul.f32 %v234, %v242
    %vm245 = vcmp.gt.f32.partialorder %v243, 0.0
    %vm246 = vcmp.gt.f32.partialorder %v244, 0.0
    %v247 = vmul.f32 %v243, 1.442695
    %v248 = vpow.pop %v247
    %v249 = vmul.f32 %v244, 1.442695
    %v250 = vpow.pop %v249
    %v251 = vsub.f32 %v248, 1.0
    %v252 = vsub.f32 %v250, 1.0
    %v253 = vmul.f32 %v251, 1.6732632
    %v254 = vmul.f32 %v252, 1.6732632
    %v255 = vsel %vm245, %v243, %v253
    %v256 = vsel %vm246, %v244, %v254
    %v257 = vmul.f32 %v255, 1.050701
    %v258 = vmul.f32 %v256, 1.050701
    %259 = vrot.lane.b32.xlu0 %v257, 17
    %v260 = vpop.permute.xlu0 %259
    %261 = vrot.lane.b32.xlu0 %v258, 17
    %v262 = vpop.permute.xlu0 %261
    %v263 = vlaneseq
    %v264 = vand.u32 %v263, 127
    %vm265 = vcmp.lt.s32.totalorder %v264, 17
    %v266 = vsel %vm265, %v260, %v262
    %v267 = vsel %vm265, %v262, %v260
    %v268 = vlaneseq
    %v269 = vshrl.u32 %v268, 7
    %v270 = vsub.s32 0, %v269
    %v271 = vrot.slane %v87, %v270
    %v272 = vlaneseq
    %v273 = vshrl.u32 %v272, 7
    %v274 = vsub.s32 0, %v273
    %v275 = vrot.slane %v88, %v274
    %v276 = vmul.f32 %v267, %v271
    %v277 = vmul.f32 %v266, %v275
    %278 = vrot.lane.b32.xlu0 %v257, 16
    %v279 = vpop.permute.xlu0 %278
    %280 = vrot.lane.b32.xlu0 %v258, 16
    %v281 = vpop.permute.xlu0 %280
    %vm282 = vcmp.lt.s32.totalorder %v264, 16
    %v283 = vsel %vm282, %v279, %v281
    %v284 = vsel %vm282, %v281, %v279
    %v285 = vlaneseq
    %v286 = vshrl.u32 %v285, 7
    %v287 = vsub.s32 1, %v286
    %v288 = vrot.slane %v87, %v287
    %v289 = vlaneseq
    %v290 = vshrl.u32 %v289, 7
    %v291 = vsub.s32 1, %v290
    %v292 = vrot.slane %v88, %v291
    %v293 = vmul.f32 %v284, %v288
    %v294 = vmul.f32 %v283, %v292
    %295 = vrot.lane.b32.xlu0 %v257, 15
    %v296 = vpop.permute.xlu0 %295
    %297 = vrot.lane.b32.xlu0 %v258, 15
    %v298 = vpop.permute.xlu0 %297
    %vm299 = vcmp.lt.s32.totalorder %v264, 15
    %v300 = vsel %vm299, %v296, %v298
    %v301 = vsel %vm299, %v298, %v296
    %v302 = vlaneseq
    %v303 = vshrl.u32 %v302, 7
    %v304 = vsub.s32 2, %v303
    %v305 = vrot.slane %v87, %v304
    %v306 = vlaneseq
    %v307 = vshrl.u32 %v306, 7
    %v308 = vsub.s32 2, %v307
    %v309 = vrot.slane %v88, %v308
    %v310 = vmul.f32 %v301, %v305
    %v311 = vmul.f32 %v300, %v309
    %312 = vrot.lane.b32.xlu0 %v257, 1
    %v313 = vpop.permute.xlu0 %312
    %314 = vrot.lane.b32.xlu0 %v258, 1
    %v315 = vpop.permute.xlu0 %314
    %vm316 = vcmp.lt.s32.totalorder %v264, 1
    %v317 = vsel %vm316, %v313, %v315
    %v318 = vsel %vm316, %v315, %v313
    %v319 = vlaneseq
    %v320 = vshrl.u32 %v319, 7
    %v321 = vsub.s32 3, %v320
    %v322 = vrot.slane %v87, %v321
    %v323 = vlaneseq
    %v324 = vshrl.u32 %v323, 7
    %v325 = vsub.s32 3, %v324
    %v326 = vrot.slane %v88, %v325
    %v327 = vmul.f32 %v318, %v322
    %v328 = vmul.f32 %v317, %v326
    %329 = vrot.lane.b32.xlu0 %v257, 127
    %v330 = vpop.permute.xlu0 %329
    %331 = vrot.lane.b32.xlu0 %v258, 127
    %v332 = vpop.permute.xlu0 %331
    %vm333 = vcmp.lt.s32.totalorder %v264, 127
    %v334 = vsel %vm333, %v330, %v332
    %v335 = vsel %vm333, %v332, %v330
    %v336 = vlaneseq
    %v337 = vshrl.u32 %v336, 7
    %v338 = vsub.s32 4, %v337
    %v339 = vrot.slane %v87, %v338
    %v340 = vlaneseq
    %v341 = vshrl.u32 %v340, 7
    %v342 = vsub.s32 4, %v341
    %v343 = vrot.slane %v88, %v342
    %v344 = vmul.f32 %v334, %v339
    %v345 = vmul.f32 %v335, %v343
    %346 = vrot.lane.b32.xlu0 %v257, 113
    %v347 = vpop.permute.xlu0 %346
    %348 = vrot.lane.b32.xlu0 %v258, 113
    %v349 = vpop.permute.xlu0 %348
    %vm350 = vcmp.lt.s32.totalorder %v264, 113
    %v351 = vsel %vm350, %v347, %v349
    %v352 = vsel %vm350, %v349, %v347
    %v353 = vlaneseq
    %v354 = vshrl.u32 %v353, 7
    %v355 = vsub.s32 5, %v354
    %v356 = vrot.slane %v87, %v355
    %v357 = vlaneseq
    %v358 = vshrl.u32 %v357, 7
    %v359 = vsub.s32 5, %v358
    %v360 = vrot.slane %v88, %v359
    %v361 = vmul.f32 %v351, %v356
    %v362 = vmul.f32 %v352, %v360
    %363 = vrot.lane.b32.xlu0 %v257, 112
    %v364 = vpop.permute.xlu0 %363
    %365 = vrot.lane.b32.xlu0 %v258, 112
    %v366 = vpop.permute.xlu0 %365
    %vm367 = vcmp.lt.s32.totalorder %v264, 112
    %v368 = vsel %vm367, %v364, %v366
    %v369 = vsel %vm367, %v366, %v364
    %v370 = vlaneseq
    %v371 = vshrl.u32 %v370, 7
    %v372 = vsub.s32 6, %v371
    %v373 = vrot.slane %v87, %v372
    %v374 = vlaneseq
    %v375 = vshrl.u32 %v374, 7
    %v376 = vsub.s32 6, %v375
    %v377 = vrot.slane %v88, %v376
    %v378 = vmul.f32 %v368, %v373
    %v379 = vmul.f32 %v369, %v377
    %380 = vrot.lane.b32.xlu0 %v257, 111
    %v381 = vpop.permute.xlu0 %380
    %382 = vrot.lane.b32.xlu0 %v258, 111
    %v383 = vpop.permute.xlu0 %382
    %vm384 = vcmp.lt.s32.totalorder %v264, 111
    %v385 = vsel %vm384, %v381, %v383
    %v386 = vsel %vm384, %v383, %v381
    %v387 = vlaneseq
    %v388 = vshrl.u32 %v387, 7
    %v389 = vsub.s32 7, %v388
    %v390 = vrot.slane %v87, %v389
    %v391 = vlaneseq
    %v392 = vshrl.u32 %v391, 7
    %v393 = vsub.s32 7, %v392
    %v394 = vrot.slane %v88, %v393
    %v395 = vmul.f32 %v385, %v390
    %v396 = vmul.f32 %v386, %v394
    %vm397 = vcmask 588800
    %v399 = vsel %vm397, %v81, 0
    %401 = vmatprep.subr.mxu0 0.0
    %402 = vmatpush1.msra.mxu0 0.0
    %403 = vmatprep.subr.mxu0 0.0
    %404 = vmatpush1.msra.mxu0 0.0
    %405 = vmatprep.subr.mxu0 0.0
    %406 = vmatpush1.msra.mxu0 0.0
    %407 = vmatprep.subr.mxu0 0.0
    %408 = vmatpush1.msra.mxu0 0.0
    %409 = vmatprep.subr.mxu0 0.0
    %410 = vmatpush1.msra.mxu0 0.0
    %411 = vmatprep.subr.mxu0 0.0
    %412 = vmatpush1.msra.mxu0 0.0
    %413 = vmatprep.subr.mxu0 0.0
    %414 = vmatpush1.msra.mxu0 0.0
    %415 = vmatprep.subr.mxu0 %v396
    %416 = vmatpush1.msra.mxu0 %v395
    %417 = vmatprep.subr.mxu0 %v379
    %418 = vmatpush1.msra.mxu0 %v378
    %419 = vmatprep.subr.mxu0 %v362
    %420 = vmatpush1.msra.mxu0 %v361
    %421 = vmatprep.subr.mxu0 %v345
    %422 = vmatpush1.msra.mxu0 %v344
    %423 = vmatprep.subr.mxu0 %v258
    %424 = vmatpush1.msra.mxu0 %v257
    %425 = vmatprep.subr.mxu0 %v328
    %426 = vmatpush1.msra.mxu0 %v327
    %427 = vmatprep.subr.mxu0 %v311
    %428 = vmatpush1.msra.mxu0 %v310
    %429 = vmatprep.subr.mxu0 %v294
    %430 = vmatpush1.msra.mxu0 %v293
    %431 = vmatprep.subr.mxu0 %v277
    %432 = vmatpush1.msra.mxu0 %v276
    %433 = vmatprep.subr.mxu0 0.0
    %434 = vmatpush2.msra.mxu0 0.0
    %435 = vmatprep.subr.mxu0 0.0
    %436 = vmatpush2.msra.mxu0 0.0
    %437 = vmatprep.subr.mxu0 0.0
    %438 = vmatpush2.msra.mxu0 0.0
    %439 = vmatprep.subr.mxu0 0.0
    %440 = vmatpush2.msra.mxu0 0.0
    %441 = vmatprep.subr.mxu0 0.0
    %442 = vmatpush2.msra.mxu0 0.0
    %443 = vmatprep.subr.mxu0 0.0
    %444 = vmatpush2.msra.mxu0 0.0
    %445 = vmatprep.subr.mxu0 0.0
    %446 = vmatpush2.msra.mxu0 0.0
    %447 = vmatprep.subr.mxu0 0.0
    %448 = vmatpush2.msra.mxu0 0.0
    %449 = vmatprep.subr.mxu0 0.0
    %450 = vmatpush2.msra.mxu0 0.0
    %451 = vmatprep.subr.mxu0 0.0
    %452 = vmatpush2.msra.mxu0 0.0
    %453 = vmatprep.subr.mxu0 0.0
    %454 = vmatpush2.msra.mxu0 0.0
    %455 = vmatprep.subr.mxu0 0.0
    %456 = vmatpush2.msra.mxu0 0.0
    %457 = vmatprep.subr.mxu0 0.0
    %458 = vmatpush2.msra.mxu0 0.0
    %459 = vmatprep.subr.mxu0 0.0
    %460 = vmatpush2.msra.mxu0 0.0
    %461 = vmatprep.subr.mxu0 0.0
    %462 = vmatpush2.msra.mxu0 0.0
    %463 = vmatprep.subr.mxu0 0.0
    %464 = vmatpush2.msra.mxu0 0.0
    %465 = vmatprep.mubr.f32.mxu0 0.0
    %466 = vmatmul.mubr.f32.gmra.mxu0 %v399
    %v467 = vpop.f32.mrf.mxu0
    %v468 = vadd.f32 0.0, %v467
    %v469 = vpop.f32.mrf.mxu0
    %v470 = vadd.f32 0.0, %v469
    %471 = vdwg.mxu0
    %v472 = vadd.f32 %v468, %v470
    %473 = vadd.xlane.f32.xlu0 %v472
    %v474 = vpop.xlane.xlu0 %473
    %v475 = vmul.f32 %v474, %v231
    %v476 = vsub.f32 %v468, %v475
    %v477 = vsub.f32 %v470, %v475
    %v478 = vmul.f32 %v476, %v476
    %v479 = vmul.f32 %v477, %v477
    %v480 = vadd.f32 %v478, %v479
    %481 = vadd.xlane.f32.xlu0 %v480
    %v482 = vpop.xlane.xlu0 %481
    %v483 = vmul.f32 %v482, %v231
    %v484 = vadd.f32 %v483, 1e-05
    %v485 = vrsqrt.pop %v484
    %v486 = vmul.f32 %v476, %v485
    %v487 = vmul.f32 %v477, %v485
    %vm488 = vcmp.gt.f32.partialorder %v486, 0.0
    %vm489 = vcmp.gt.f32.partialorder %v487, 0.0
    %v490 = vmul.f32 %v486, 1.442695
    %v491 = vpow.pop %v490
    %v492 = vmul.f32 %v487, 1.442695
    %v493 = vpow.pop %v492
    %v494 = vsub.f32 %v491, 1.0
    %v495 = vsub.f32 %v493, 1.0
    %v496 = vmul.f32 %v494, 1.6732632
    %v497 = vmul.f32 %v495, 1.6732632
    %v498 = vsel %vm488, %v486, %v496
    %v499 = vsel %vm489, %v487, %v497
    %v500 = vmul.f32 %v498, 1.050701
    %v501 = vmul.f32 %v499, 1.050701
    %502 = vrot.lane.b32.xlu0 %v500, 17
    %v503 = vpop.permute.xlu0 %502
    %504 = vrot.lane.b32.xlu0 %v501, 17
    %v505 = vpop.permute.xlu0 %504
    %v506 = vsel %vm265, %v503, %v505
    %v507 = vsel %vm265, %v505, %v503
    %v508 = vmul.f32 %v507, %v271
    %v509 = vmul.f32 %v506, %v275
    %510 = vrot.lane.b32.xlu0 %v500, 16
    %v511 = vpop.permute.xlu0 %510
    %512 = vrot.lane.b32.xlu0 %v501, 16
    %v513 = vpop.permute.xlu0 %512
    %v514 = vsel %vm282, %v511, %v513
    %v515 = vsel %vm282, %v513, %v511
    %v516 = vmul.f32 %v515, %v288
    %v517 = vmul.f32 %v514, %v292
    %518 = vrot.lane.b32.xlu0 %v500, 15
    %v519 = vpop.permute.xlu0 %518
    %520 = vrot.lane.b32.xlu0 %v501, 15
    %v521 = vpop.permute.xlu0 %520
    %v522 = vsel %vm299, %v519, %v521
    %v523 = vsel %vm299, %v521, %v519
    %v524 = vmul.f32 %v523, %v305
    %v525 = vmul.f32 %v522, %v309
    %526 = vrot.lane.b32.xlu0 %v500, 1
    %v527 = vpop.permute.xlu0 %526
    %528 = vrot.lane.b32.xlu0 %v501, 1
    %v529 = vpop.permute.xlu0 %528
    %v530 = vsel %vm316, %v527, %v529
    %v531 = vsel %vm316, %v529, %v527
    %v532 = vmul.f32 %v531, %v322
    %v533 = vmul.f32 %v530, %v326
    %534 = vrot.lane.b32.xlu0 %v500, 127
    %v535 = vpop.permute.xlu0 %534
    %536 = vrot.lane.b32.xlu0 %v501, 127
    %v537 = vpop.permute.xlu0 %536
    %v538 = vsel %vm333, %v535, %v537
    %v539 = vsel %vm333, %v537, %v535
    %v540 = vmul.f32 %v538, %v339
    %v541 = vmul.f32 %v539, %v343
    %542 = vrot.lane.b32.xlu0 %v500, 113
    %v543 = vpop.permute.xlu0 %542
    %544 = vrot.lane.b32.xlu0 %v501, 113
    %v545 = vpop.permute.xlu0 %544
    %v546 = vsel %vm350, %v543, %v545
    %v547 = vsel %vm350, %v545, %v543
    %v548 = vmul.f32 %v546, %v356
    %v549 = vmul.f32 %v547, %v360
    %550 = vrot.lane.b32.xlu0 %v500, 112
    %v551 = vpop.permute.xlu0 %550
    %552 = vrot.lane.b32.xlu0 %v501, 112
    %v553 = vpop.permute.xlu0 %552
    %v554 = vsel %vm367, %v551, %v553
    %v555 = vsel %vm367, %v553, %v551
    %v556 = vmul.f32 %v554, %v373
    %v557 = vmul.f32 %v555, %v377
    %558 = vrot.lane.b32.xlu0 %v500, 111
    %v559 = vpop.permute.xlu0 %558
    %560 = vrot.lane.b32.xlu0 %v501, 111
    %v561 = vpop.permute.xlu0 %560
    %v562 = vsel %vm384, %v559, %v561
    %v563 = vsel %vm384, %v561, %v559
    %v564 = vmul.f32 %v562, %v390
    %v565 = vmul.f32 %v563, %v394
    %v567 = vsel %vm397, %v82, 0
    %569 = vmatprep.subr.mxu0 0.0
    %570 = vmatpush1.msra.mxu0 0.0
    %571 = vmatprep.subr.mxu0 0.0
    %572 = vmatpush1.msra.mxu0 0.0
    %573 = vmatprep.subr.mxu0 0.0
    %574 = vmatpush1.msra.mxu0 0.0
    %575 = vmatprep.subr.mxu0 0.0
    %576 = vmatpush1.msra.mxu0 0.0
    %577 = vmatprep.subr.mxu0 0.0
    %578 = vmatpush1.msra.mxu0 0.0
    %579 = vmatprep.subr.mxu0 0.0
    %580 = vmatpush1.msra.mxu0 0.0
    %581 = vmatprep.subr.mxu0 0.0
    %582 = vmatpush1.msra.mxu0 0.0
    %583 = vmatprep.subr.mxu0 %v565
    %584 = vmatpush1.msra.mxu0 %v564
    %585 = vmatprep.subr.mxu0 %v557
    %586 = vmatpush1.msra.mxu0 %v556
    %587 = vmatprep.subr.mxu0 %v549
    %588 = vmatpush1.msra.mxu0 %v548
    %589 = vmatprep.subr.mxu0 %v541
    %590 = vmatpush1.msra.mxu0 %v540
    %591 = vmatprep.subr.mxu0 %v501
    %592 = vmatpush1.msra.mxu0 %v500
    %593 = vmatprep.subr.mxu0 %v533
    %594 = vmatpush1.msra.mxu0 %v532
    %595 = vmatprep.subr.mxu0 %v525
    %596 = vmatpush1.msra.mxu0 %v524
    %597 = vmatprep.subr.mxu0 %v517
    %598 = vmatpush1.msra.mxu0 %v516
    %599 = vmatprep.subr.mxu0 %v509
    %600 = vmatpush1.msra.mxu0 %v508
    %601 = vmatprep.subr.mxu0 0.0
    %602 = vmatpush2.msra.mxu0 0.0
    %603 = vmatprep.subr.mxu0 0.0
    %604 = vmatpush2.msra.mxu0 0.0
    %605 = vmatprep.subr.mxu0 0.0
    %606 = vmatpush2.msra.mxu0 0.0
    %607 = vmatprep.subr.mxu0 0.0
    %608 = vmatpush2.msra.mxu0 0.0
    %609 = vmatprep.subr.mxu0 0.0
    %610 = vmatpush2.msra.mxu0 0.0
    %611 = vmatprep.subr.mxu0 0.0
    %612 = vmatpush2.msra.mxu0 0.0
    %613 = vmatprep.subr.mxu0 0.0
    %614 = vmatpush2.msra.mxu0 0.0
    %615 = vmatprep.subr.mxu0 0.0
    %616 = vmatpush2.msra.mxu0 0.0
    %617 = vmatprep.subr.mxu0 0.0
    %618 = vmatpush2.msra.mxu0 0.0
    %619 = vmatprep.subr.mxu0 0.0
    %620 = vmatpush2.msra.mxu0 0.0
    %621 = vmatprep.subr.mxu0 0.0
    %622 = vmatpush2.msra.mxu0 0.0
    %623 = vmatprep.subr.mxu0 0.0
    %624 = vmatpush2.msra.mxu0 0.0
    %625 = vmatprep.subr.mxu0 0.0
    %626 = vmatpush2.msra.mxu0 0.0
    %627 = vmatprep.subr.mxu0 0.0
    %628 = vmatpush2.msra.mxu0 0.0
    %629 = vmatprep.subr.mxu0 0.0
    %630 = vmatpush2.msra.mxu0 0.0
    %631 = vmatprep.subr.mxu0 0.0
    %632 = vmatpush2.msra.mxu0 0.0
    %633 = vmatprep.mubr.f32.mxu0 0.0
    %634 = vmatmul.mubr.f32.gmra.mxu0 %v567
    %v635 = vpop.f32.mrf.mxu0
    %v636 = vadd.f32 0.0, %v635
    %v637 = vpop.f32.mrf.mxu0
    %v638 = vadd.f32 0.0, %v637
    %639 = vdwg.mxu0
    %v640 = vadd.f32 %v636, %v638
    %641 = vadd.xlane.f32.xlu0 %v640
    %v642 = vpop.xlane.xlu0 %641
    %v643 = vmul.f32 %v642, %v231
    %v644 = vsub.f32 %v636, %v643
    %v645 = vsub.f32 %v638, %v643
    %v646 = vmul.f32 %v644, %v644
    %v647 = vmul.f32 %v645, %v645
    %v648 = vadd.f32 %v646, %v647
    %649 = vadd.xlane.f32.xlu0 %v648
    %v650 = vpop.xlane.xlu0 %649
    %v651 = vmul.f32 %v650, %v231
    %v652 = vadd.f32 %v651, 1e-05
    %v653 = vrsqrt.pop %v652
    %v654 = vmul.f32 %v644, %v653
    %v655 = vmul.f32 %v645, %v653
    %vm656 = vcmp.gt.f32.partialorder %v654, 0.0
    %vm657 = vcmp.gt.f32.partialorder %v655, 0.0
    %v658 = vmul.f32 %v654, 1.442695
    %v659 = vpow.pop %v658
    %v660 = vmul.f32 %v655, 1.442695
    %v661 = vpow.pop %v660
    %v662 = vsub.f32 %v659, 1.0
    %v663 = vsub.f32 %v661, 1.0
    %v664 = vmul.f32 %v662, 1.6732632
    %v665 = vmul.f32 %v663, 1.6732632
    %v666 = vsel %vm656, %v654, %v664
    %v667 = vsel %vm657, %v655, %v665
    %v668 = vmul.f32 %v666, 1.050701
    %v669 = vmul.f32 %v667, 1.050701
    %v671 = vsel %vm153, %v76, 0
    %v674 = vsel %vm153, %v77, 0
    %v677 = vsel %vm153, %v78, 0
    %v680 = vsel %vm153, %v79, 0
    %682 = vmatprep.subr.mxu0 0.0
    %683 = vmatpush1.msra.mxu0 0.0
    %684 = vmatprep.subr.mxu0 0.0
    %685 = vmatpush1.msra.mxu0 0.0
    %686 = vmatprep.subr.mxu0 0.0
    %687 = vmatpush1.msra.mxu0 0.0
    %688 = vmatprep.subr.mxu0 0.0
    %689 = vmatpush1.msra.mxu0 0.0
    %690 = vmatprep.subr.mxu0 0.0
    %691 = vmatpush1.msra.mxu0 0.0
    %692 = vmatprep.subr.mxu0 0.0
    %693 = vmatpush1.msra.mxu0 0.0
    %694 = vmatprep.subr.mxu0 0.0
    %695 = vmatpush1.msra.mxu0 0.0
    %696 = vmatprep.subr.mxu0 0.0
    %697 = vmatpush1.msra.mxu0 0.0
    %698 = vmatprep.subr.mxu0 0.0
    %699 = vmatpush1.msra.mxu0 0.0
    %700 = vmatprep.subr.mxu0 0.0
    %701 = vmatpush1.msra.mxu0 0.0
    %702 = vmatprep.subr.mxu0 0.0
    %703 = vmatpush1.msra.mxu0 0.0
    %704 = vmatprep.subr.mxu0 0.0
    %705 = vmatpush1.msra.mxu0 0.0
    %706 = vmatprep.subr.mxu0 %v96
    %707 = vmatpush1.msra.mxu0 %v95
    %708 = vmatprep.subr.mxu0 %v94
    %709 = vmatpush1.msra.mxu0 %v93
    %710 = vmatprep.subr.mxu0 %v92
    %711 = vmatpush1.msra.mxu0 %v91
    %712 = vmatprep.subr.mxu0 %v90
    %713 = vmatpush1.msra.mxu0 %v89
    %714 = vmatprep.subr.mxu0 0.0
    %715 = vmatpush2.msra.mxu0 0.0
    %716 = vmatprep.subr.mxu0 0.0
    %717 = vmatpush2.msra.mxu0 0.0
    %718 = vmatprep.subr.mxu0 0.0
    %719 = vmatpush2.msra.mxu0 0.0
    %720 = vmatprep.subr.mxu0 0.0
    %721 = vmatpush2.msra.mxu0 0.0
    %722 = vmatprep.subr.mxu0 0.0
    %723 = vmatpush2.msra.mxu0 0.0
    %724 = vmatprep.subr.mxu0 0.0
    %725 = vmatpush2.msra.mxu0 0.0
    %726 = vmatprep.subr.mxu0 0.0
    %727 = vmatpush2.msra.mxu0 0.0
    %728 = vmatprep.subr.mxu0 0.0
    %729 = vmatpush2.msra.mxu0 0.0
    %730 = vmatprep.subr.mxu0 0.0
    %731 = vmatpush2.msra.mxu0 0.0
    %732 = vmatprep.subr.mxu0 0.0
    %733 = vmatpush2.msra.mxu0 0.0
    %734 = vmatprep.subr.mxu0 0.0
    %735 = vmatpush2.msra.mxu0 0.0
    %736 = vmatprep.subr.mxu0 0.0
    %737 = vmatpush2.msra.mxu0 0.0
    %738 = vmatprep.subr.mxu0 0.0
    %739 = vmatpush2.msra.mxu0 0.0
    %740 = vmatprep.subr.mxu0 0.0
    %741 = vmatpush2.msra.mxu0 0.0
    %742 = vmatprep.subr.mxu0 0.0
    %743 = vmatpush2.msra.mxu0 0.0
    %744 = vmatprep.subr.mxu0 0.0
    %745 = vmatpush2.msra.mxu0 0.0
    %746 = vmatprep.mubr.f32.mxu0 0.0
    %747 = vmatmul.mubr.f32.gmra.mxu0 %v671
    %v748 = vpop.f32.mrf.mxu0
    %v749 = vadd.f32 0.0, %v748
    %v750 = vpop.f32.mrf.mxu0
    %v751 = vadd.f32 0.0, %v750
    %752 = vmatprep.mubr.f32.mxu0 0.0
    %753 = vmatmul.mubr.f32.gmra.mxu0 %v674
    %v754 = vpop.f32.mrf.mxu0
    %v755 = vadd.f32 0.0, %v754
    %v756 = vpop.f32.mrf.mxu0
    %v757 = vadd.f32 0.0, %v756
    %758 = vmatprep.mubr.f32.mxu0 0.0
    %759 = vmatmul.mubr.f32.gmra.mxu0 %v677
    %v760 = vpop.f32.mrf.mxu0
    %v761 = vadd.f32 0.0, %v760
    %v762 = vpop.f32.mrf.mxu0
    %v763 = vadd.f32 0.0, %v762
    %764 = vmatprep.mubr.f32.mxu0 0.0
    %765 = vmatmul.mubr.f32.gmra.mxu0 %v680
    %v766 = vpop.f32.mrf.mxu0
    %v767 = vadd.f32 0.0, %v766
    %v768 = vpop.f32.mrf.mxu0
    %v769 = vadd.f32 0.0, %v768
    %770 = vdwg.mxu0
    %vm771 = vcmp.gt.f32.partialorder %v749, 0.0
    %vm772 = vcmp.gt.f32.partialorder %v751, 0.0
    %vm773 = vcmp.gt.f32.partialorder %v755, 0.0
    %vm774 = vcmp.gt.f32.partialorder %v757, 0.0
    %vm775 = vcmp.gt.f32.partialorder %v761, 0.0
    %vm776 = vcmp.gt.f32.partialorder %v763, 0.0
    %vm777 = vcmp.gt.f32.partialorder %v767, 0.0
    %vm778 = vcmp.gt.f32.partialorder %v769, 0.0
    %v779 = vmul.f32 %v749, 1.442695
    %v780 = vpow.pop %v779
    %v781 = vmul.f32 %v751, 1.442695
    %v782 = vpow.pop %v781
    %v783 = vmul.f32 %v755, 1.442695
    %v784 = vpow.pop %v783
    %v785 = vmul.f32 %v757, 1.442695
    %v786 = vpow.pop %v785
    %v787 = vmul.f32 %v761, 1.442695
    %v788 = vpow.pop %v787
    %v789 = vmul.f32 %v763, 1.442695
    %v790 = vpow.pop %v789
    %v791 = vmul.f32 %v767, 1.442695
    %v792 = vpow.pop %v791
    %v793 = vmul.f32 %v769, 1.442695
    %v794 = vpow.pop %v793
    %v795 = vsub.f32 %v780, 1.0
    %v796 = vsub.f32 %v782, 1.0
    %v797 = vsub.f32 %v784, 1.0
    %v798 = vsub.f32 %v786, 1.0
    %v799 = vsub.f32 %v788, 1.0
    %v800 = vsub.f32 %v790, 1.0
    %v801 = vsub.f32 %v792, 1.0
    %v802 = vsub.f32 %v794, 1.0
    %v803 = vmul.f32 %v795, 1.6732632
    %v804 = vmul.f32 %v796, 1.6732632
    %v805 = vmul.f32 %v797, 1.6732632
    %v806 = vmul.f32 %v798, 1.6732632
    %v807 = vmul.f32 %v799, 1.6732632
    %v808 = vmul.f32 %v800, 1.6732632
    %v809 = vmul.f32 %v801, 1.6732632
    %v810 = vmul.f32 %v802, 1.6732632
    %v811 = vsel %vm771, %v749, %v803
    %v812 = vsel %vm772, %v751, %v804
    %v813 = vsel %vm773, %v755, %v805
    %v814 = vsel %vm774, %v757, %v806
    %v815 = vsel %vm775, %v761, %v807
    %v816 = vsel %vm776, %v763, %v808
    %v817 = vsel %vm777, %v767, %v809
    %v818 = vsel %vm778, %v769, %v810
    %v819 = vmul.f32 %v811, 1.050701
    %v820 = vmul.f32 %v812, 1.050701
    %v821 = vmul.f32 %v813, 1.050701
    %v822 = vmul.f32 %v814, 1.050701
    %v823 = vmul.f32 %v815, 1.050701
    %v824 = vmul.f32 %v816, 1.050701
    %v825 = vmul.f32 %v817, 1.050701
    %v826 = vmul.f32 %v818, 1.050701
    %vm827 = vcmask 64512
    %v829 = vsel %vm827, %v83, 0
    %v832 = vsel %vm827, %v84, 0
    %v835 = vsel %vm827, %v85, 0
    %v838 = vsel %vm827, %v86, 0
    %840 = vmatprep.subr.mxu0 0.0
    %841 = vmatpush1.msra.mxu0 0.0
    %842 = vmatprep.subr.mxu0 0.0
    %843 = vmatpush1.msra.mxu0 0.0
    %844 = vmatprep.subr.mxu0 0.0
    %845 = vmatpush1.msra.mxu0 0.0
    %846 = vmatprep.subr.mxu0 0.0
    %847 = vmatpush1.msra.mxu0 0.0
    %848 = vmatprep.subr.mxu0 0.0
    %849 = vmatpush1.msra.mxu0 0.0
    %850 = vmatprep.subr.mxu0 0.0
    %851 = vmatpush1.msra.mxu0 0.0
    %852 = vmatprep.subr.mxu0 0.0
    %853 = vmatpush1.msra.mxu0 0.0
    %854 = vmatprep.subr.mxu0 0.0
    %855 = vmatpush1.msra.mxu0 0.0
    %856 = vmatprep.subr.mxu0 0.0
    %857 = vmatpush1.msra.mxu0 0.0
    %858 = vmatprep.subr.mxu0 0.0
    %859 = vmatpush1.msra.mxu0 0.0
    %860 = vmatprep.subr.mxu0 0.0
    %861 = vmatpush1.msra.mxu0 0.0
    %862 = vmatprep.subr.mxu0 0.0
    %863 = vmatpush1.msra.mxu0 0.0
    %864 = vmatprep.subr.mxu0 0.0
    %865 = vmatpush1.msra.mxu0 0.0
    %866 = vmatprep.subr.mxu0 0.0
    %867 = vmatpush1.msra.mxu0 0.0
    %868 = vmatprep.subr.mxu0 0.0
    %869 = vmatpush1.msra.mxu0 0.0
    %870 = vmatprep.subr.mxu0 %v669
    %871 = vmatpush1.msra.mxu0 %v668
    %872 = vmatprep.subr.mxu0 0.0
    %873 = vmatpush2.msra.mxu0 0.0
    %874 = vmatprep.subr.mxu0 0.0
    %875 = vmatpush2.msra.mxu0 0.0
    %876 = vmatprep.subr.mxu0 0.0
    %877 = vmatpush2.msra.mxu0 0.0
    %878 = vmatprep.subr.mxu0 0.0
    %879 = vmatpush2.msra.mxu0 0.0
    %880 = vmatprep.subr.mxu0 0.0
    %881 = vmatpush2.msra.mxu0 0.0
    %882 = vmatprep.subr.mxu0 0.0
    %883 = vmatpush2.msra.mxu0 0.0
    %884 = vmatprep.subr.mxu0 0.0
    %885 = vmatpush2.msra.mxu0 0.0
    %886 = vmatprep.subr.mxu0 0.0
    %887 = vmatpush2.msra.mxu0 0.0
    %888 = vmatprep.subr.mxu0 0.0
    %889 = vmatpush2.msra.mxu0 0.0
    %890 = vmatprep.subr.mxu0 0.0
    %891 = vmatpush2.msra.mxu0 0.0
    %892 = vmatprep.subr.mxu0 0.0
    %893 = vmatpush2.msra.mxu0 0.0
    %894 = vmatprep.subr.mxu0 0.0
    %895 = vmatpush2.msra.mxu0 0.0
    %896 = vmatprep.subr.mxu0 0.0
    %897 = vmatpush2.msra.mxu0 0.0
    %898 = vmatprep.subr.mxu0 0.0
    %899 = vmatpush2.msra.mxu0 0.0
    %900 = vmatprep.subr.mxu0 0.0
    %901 = vmatpush2.msra.mxu0 0.0
    %902 = vmatprep.subr.mxu0 0.0
    %903 = vmatpush2.msra.mxu0 0.0
    %904 = vmatprep.mubr.f32.mxu0 0.0
    %905 = vmatmul.mubr.f32.gmra.mxu0 %v829
    %v906 = vpop.f32.mrf.mxu0
    %v907 = vadd.f32 %v819, %v906
    %v908 = vpop.f32.mrf.mxu0
    %v909 = vadd.f32 %v820, %v908
    %910 = vmatprep.mubr.f32.mxu0 0.0
    %911 = vmatmul.mubr.f32.gmra.mxu0 %v832
    %v912 = vpop.f32.mrf.mxu0
    %v913 = vadd.f32 %v821, %v912
    %v914 = vpop.f32.mrf.mxu0
    %v915 = vadd.f32 %v822, %v914
    %916 = vmatprep.mubr.f32.mxu0 0.0
    %917 = vmatmul.mubr.f32.gmra.mxu0 %v835
    %v918 = vpop.f32.mrf.mxu0
    %v919 = vadd.f32 %v823, %v918
    %v920 = vpop.f32.mrf.mxu0
    %v921 = vadd.f32 %v824, %v920
    %922 = vmatprep.mubr.f32.mxu0 0.0
    %923 = vmatmul.mubr.f32.gmra.mxu0 %v838
    %v924 = vpop.f32.mrf.mxu0
    %v925 = vadd.f32 %v825, %v924
    %v926 = vpop.f32.mrf.mxu0
    %v927 = vadd.f32 %v826, %v926
    %928 = vdwg.mxu0
    %929 = vst [vmem:[#allocation10] sm:$0xff] %v907
    %930 = vst [vmem:[#allocation10 + $0x8] sm:$0xff] %v909
    %931 = vst [vmem:[#allocation10 + $0x10] sm:$0xff] %v913
    %932 = vst [vmem:[#allocation10 + $0x18] sm:$0xff] %v915
    %933 = vst [vmem:[#allocation10 + $0x20] sm:$0xff] %v919
    %934 = vst [vmem:[#allocation10 + $0x28] sm:$0xff] %v921
    %935 = vst [vmem:[#allocation10 + $0x30] sm:$0xff] %v925
    %936 = vst [vmem:[#allocation10 + $0x38] sm:$0xff] %v927
    // Predicated region
    $region46: #{tpu_custom_call.1} parent=1 // pred_check
      _
    $region47: #{tpu_custom_call.1} parent=1 // pred_check_branch
      %938 = sbr.rel (0) target = $region49
    $region48: #{tpu_custom_call.1} parent=1 // pred_region
      %s940 = ssub.s32 1024, 1024
      %941 = vsyncadd [#allocation4], %s940
      %s942 = sshll.u32 [#allocation10], 4
      %s943 = int_to_ptr.vmem [resolvable:$true] %s942
      %948 = dma.vmem_to_hbm [thread:$0]  %s943, 1024, %s7, [#allocation4], 256, 256, 16
    $region49: #{tpu_custom_call.1} parent=1 // pred_fallthru
      _
    // Predicated region
    $region50: #{tpu_custom_call.1} parent=1 // pred_check
      _
    $region51: #{tpu_custom_call.1} parent=1 // pred_check_branch
      %950 = sbr.rel (0) target = $region53
    $region52: #{tpu_custom_call.1} parent=1 // pred_region
      %951 = dma.done [#allocation4], 1024
    $region53: #{tpu_custom_call.1} parent=1 // pred_fallthru
      _
    %952 = vsyncpa [#allocation3], 1
    %953 = vsyncpa [#allocation6], 1
    %954 = vsyncpa [#allocation9], 1
    %955 = vsyncpa [#allocation4], 1

</llo_original>
